<compile_context>
chip_gen: v7x
topology: tpu7x:2x2x1
jax: 0.10.0
libtpu: 0.0.40
codegen_flags: <defaults>
</compile_context>

<pallas_src>
import functools

import jax
import jax.numpy as jnp
from jax.experimental import pallas as pl
from jax.experimental.pallas import tpu as pltpu


def _round_up(x: int, m: int) -> int:
    return ((x + m - 1) // m) * m


def _patch_encoder_kernel(x_ref, w_ref, pos_ref, out_ref, *, reps):
    # x_ref   : (tm, Din)      f32  -- row tile of flattened patches
    # w_ref   : (Din, Dout_p)  bf16 -- resident projection weight (constant block)
    # pos_ref : (N, Dout_p)    f32  -- resident pos-emb + bias (constant block)
    # out_ref : (tm, Dout_p)   f32
    a = jnp.dot(x_ref[...].astype(jnp.bfloat16), w_ref[...],
                preferred_element_type=jnp.float32)
    pos = pos_ref[...]
    if reps > 1:
        # Row tile spans `reps` batch elements; replicate inside VMEM only.
        pos = jnp.tile(pos, (reps, 1))
    out_ref[...] = (a + pos).astype(out_ref.dtype)


def prepare_patch_encoder_params(weight, bias, pos_emb):
    """One-time parameter prep, hoisted out of the per-call path.

    weight : (Dout, Din)  nn.Linear layout
    bias   : (Dout,)
    pos_emb: (N, Dout)    nn.Embedding table

    Returns (w_bf: (Din, Dout_p) bf16, pos_b: (N, Dout_p) f32, Dout).
    Dout is padded to a lane-dense multiple of 128; the Linear bias is folded
    into the position-embedding table.
    """
    Dout, _Din = weight.shape
    Dout_p = _round_up(Dout, 128)
    w_t = jnp.pad(jnp.transpose(weight), ((0, 0), (0, Dout_p - Dout)))
    w_bf = w_t.astype(jnp.bfloat16)                               # (Din, Dout_p)
    pos_b = jnp.pad(pos_emb + bias[None, :], ((0, 0), (0, Dout_p - Dout)))
    return w_bf, pos_b.astype(jnp.float32), Dout


def _pick_tm(R: int, N: int, cap: int = 1024) -> int:
    """Largest batch-aligned (multiple of N) row tile that divides R exactly,
    satisfies the (8,*) block rule, and stays <= cap; prefers a choice that
    leaves >=2 grid steps (feeds both v7x TensorCores)."""
    cap = min(R, max(cap, N))
    valid = []
    t = N
    while t <= cap:
        if R % t == 0 and (t % 8 == 0 or t == R):
            valid.append(t)
        t += N
    if not valid:
        return R                      # full-extent block: always legal
    multi_step = [t for t in valid if R // t >= 2]
    return max(multi_step) if multi_step else max(valid)


def patch_encoder(patch, w_bf, pos_b, out_dim):
    """patch: (B, N, Din) f32; w_bf/pos_b from prepare_patch_encoder_params.
    Returns (B, N, out_dim) f32."""
    B, N, Din = patch.shape
    Dout_p = w_bf.shape[1]
    R = B * N

    # Collapse (B, N) -> rows.  No feature pad, no dtype cast, no row pad:
    # tm divides R exactly and is a multiple of N (batch-aligned tiles).
    x2d = patch.reshape(R, Din)
    tm = _pick_tm(R, N)
    reps = tm // N
    grid = (R // tm,)

    # Per-step VMEM footprint (double-buffered streams + resident blocks),
    # capped at 48 MiB so the request stays safe on v7x's 64 MiB VMEM while
    # still raising the 16/32 MiB defaults on v5e/v6e.
    vmem_bytes = (2 * tm * Din * 4            # x tiles (f32, double-buffered)
                  + 2 * tm * Dout_p * 4       # out tiles (f32, double-buffered)
                  + 2 * Din * Dout_p * 2      # resident weight (bf16)
                  + 2 * N * Dout_p * 4)       # resident pos (f32)
    vmem_limit = int(min(48 * 1024 * 1024,
                         max(32 * 1024 * 1024, 2 * vmem_bytes)))

    kernel = functools.partial(_patch_encoder_kernel, reps=reps)

    out_padded = pl.pallas_call(
        kernel,
        out_shape=jax.ShapeDtypeStruct((R, Dout_p), patch.dtype),
        grid_spec=pltpu.PrefetchScalarGridSpec(
            num_scalar_prefetch=0,
            grid=grid,
            in_specs=[
                # Row tile of patches; last dim == full array dim (no 128 pad
                # needed), f32 in HBM, cast to bf16 inside the kernel.
                pl.BlockSpec((tm, Din), lambda i: (i, 0)),
                # Resident projection weight (constant block index -> one DMA).
                pl.BlockSpec((Din, Dout_p), lambda i: (0, 0)),
                # Resident position embedding (+bias), batch-invariant.
                pl.BlockSpec((N, Dout_p), lambda i: (0, 0)),
            ],
            out_specs=pl.BlockSpec((tm, Dout_p), lambda i: (i, 0)),
        ),
        compiler_params=pltpu.CompilerParams(
            dimension_semantics=("parallel",),
            vmem_limit_bytes=vmem_limit,
        ),
        cost_estimate=pl.CostEstimate(
            flops=2 * R * Din * Dout_p,
            transcendentals=0,
            bytes_accessed=(R * Din * 4          # x read (f32)
                            + Din * Dout_p * 2   # weight read (bf16, once)
                            + N * Dout_p * 4     # pos read (f32, once)
                            + R * Dout_p * 4),   # out write (f32)
        ),
    )(x2d, w_bf, pos_b)

    return out_padded[:, :out_dim].reshape(B, N, out_dim)


def reference(patch, weight, bias, pos_emb):
    a = jnp.einsum("bnd,ed->bne", patch, weight) + bias[None, None, :]
    return a + pos_emb[None, :, :]


if __name__ == "__main__":
    # Small config consistent with the module:
    #   image_size=16, patch_size=8, channels=3  -> num_patches = (16//8)**2 = 4
    #   in_features = 8*8*3 = 192, projection_dim = 64
    batch = 2
    patch_size = 8
    channels = 3
    image_size = 16
    projection_dim = 64
    num_patches = (image_size // patch_size) ** 2          # 4
    in_features = patch_size * patch_size * channels       # 192

    key = jax.random.PRNGKey(0)
    k_patch, k_w, k_b, k_pos = jax.random.split(key, 4)

    patch = jax.random.normal(k_patch, (batch, num_patches, in_features),
                              dtype=jnp.float32)
    # Deterministic synthetic parameters (same shapes as nn.Linear / nn.Embedding).
    weight = jax.random.normal(k_w, (projection_dim, in_features),
                               dtype=jnp.float32) * 0.02
    bias = jax.random.normal(k_b, (projection_dim,), dtype=jnp.float32) * 0.02
    pos_emb = jax.random.normal(k_pos, (num_patches, projection_dim),
                                dtype=jnp.float32) * 0.02

    # One-time parameter prep (hoisted out of the per-call path).
    w_bf, pos_b, out_dim = prepare_patch_encoder_params(weight, bias, pos_emb)

    out = patch_encoder(patch, w_bf, pos_b, out_dim)
    out = jax.block_until_ready(out)

    ref = reference(patch, weight, bias, pos_emb)
    assert out.shape == (batch, num_patches, projection_dim)
    # bf16 MXU operands (f32 accumulation) -> loosened tolerance vs f32 reference.
    assert jnp.allclose(out, ref, atol=5e-2, rtol=5e-2), "mismatch vs reference"

    print("KERNEL_OK")
</pallas_src>

<mosaic_0001>
module attributes {stable_mosaic.version = 11 : i64} {
  func.func @_patch_encoder_kernel(%arg0: i32, %arg1: memref<8x192xf32, #tpu.memory_space<vmem>>, %arg2: memref<192x128xbf16, #tpu.memory_space<vmem>>, %arg3: memref<4x128xf32, #tpu.memory_space<vmem>>, %arg4: memref<8x128xf32, #tpu.memory_space<vmem>>) attributes {dimension_semantics = [#tpu.dimension_semantics<parallel>], iteration_bounds = array<i64: 1>, scalar_prefetch = 0 : i64, scratch_operands = 0 : i64, tpu.core_type = #tpu.core_type<tc>, window_params = [{transform_indices = @transform_0, window_bounds = array<i64: 8, 192>}, {pipeline_mode = #tpu.pipeline_mode<synchronous>, transform_indices = @transform_1, window_bounds = array<i64: 192, 128>}, {pipeline_mode = #tpu.pipeline_mode<synchronous>, transform_indices = @transform_2, window_bounds = array<i64: 4, 128>}, {transform_indices = @transform_3, window_bounds = array<i64: 8, 128>}]} {
    %c0 = arith.constant 0 : index
    %c0_0 = arith.constant 0 : index
    %0 = vector.load %arg1[%c0, %c0_0] : memref<8x192xf32, #tpu.memory_space<vmem>>, vector<8x192xf32>
    %1 = arith.truncf %0 : vector<8x192xf32> to vector<8x192xbf16>
    %c0_1 = arith.constant 0 : index
    %c0_2 = arith.constant 0 : index
    %2 = vector.load %arg2[%c0_1, %c0_2] : memref<192x128xbf16, #tpu.memory_space<vmem>>, vector<192x128xbf16>
    %cst = arith.constant dense<0.000000e+00> : vector<8x128xf32>
    %3 = tpu.matmul %1, %2, %cst {dimension_numbers = #tpu.dot_dimension_numbers<[1], [0], [0], [1], [0, 0, 1, 1], [], []>} : vector<8x192xbf16>, vector<192x128xbf16>, vector<8x128xf32> -> vector<8x128xf32>
    %c0_3 = arith.constant 0 : index
    %c0_4 = arith.constant 0 : index
    %4 = vector.load %arg3[%c0_3, %c0_4] : memref<4x128xf32, #tpu.memory_space<vmem>>, vector<4x128xf32>
    %5 = tpu.concatenate %4, %4 in 0 : vector<4x128xf32>, vector<4x128xf32> -> vector<8x128xf32>
    %6 = arith.addf %3, %5 : vector<8x128xf32>
    %c0_5 = arith.constant 0 : index
    %c0_6 = arith.constant 0 : index
    %7 = vector.load %arg4[%c0_5, %c0_6] : memref<8x128xf32, #tpu.memory_space<vmem>>, vector<8x128xf32>
    tpu.vector_store %arg4[%c0_5, %c0_6], %6 {strides = array<i32>} : memref<8x128xf32, #tpu.memory_space<vmem>>, vector<8x128xf32>,
    return
  }
  func.func @transform_0(%arg0: i32) -> (i32, i32) {
    %c0_i32 = arith.constant 0 : i32
    %c0_i32_0 = arith.constant 0 : i32
    return %arg0, %c0_i32 : i32, i32
  }
  func.func @transform_1(%arg0: i32) -> (i32, i32) {
    %c0_i32 = arith.constant 0 : i32
    %c0_i32_0 = arith.constant 0 : i32
    %c0_i32_1 = arith.constant 0 : i32
    return %c0_i32, %c0_i32_0 : i32, i32
  }
  func.func @transform_2(%arg0: i32) -> (i32, i32) {
    %c0_i32 = arith.constant 0 : i32
    %c0_i32_0 = arith.constant 0 : i32
    %c0_i32_1 = arith.constant 0 : i32
    return %c0_i32, %c0_i32_0 : i32, i32
  }
  func.func @transform_3(%arg0: i32) -> (i32, i32) {
    %c0_i32 = arith.constant 0 : i32
    %c0_i32_0 = arith.constant 0 : i32
    return %arg0, %c0_i32 : i32, i32
  }
}

</mosaic_0001>

<llo_original>
// kernel: tpu_custom_call.1
$region0: #{tpu_custom_call.1}
  #allocation0 [shape = 'u32[]', space=smem, size = 0x4, offset = 0x4, fixed_abs, tag = 'smem constant byte address 0x4 - core index']
  #allocation1 [shape = 'u32[144,128]{1,0:T(1,128)}', space=vmem, size = 0x12000, scoped, tag = 'internal scratch']
  %s0 = inlined_call_operand.hbm [shape: f32[8,192], index: 0, kind: input, shape index: {}]
  %s1 = inlined_call_operand.hbm [shape: bf16[192,128], index: 1, kind: input, shape index: {}]
  %s2 = inlined_call_operand.vmem [shape: f32[4,128], index: 2, kind: input, shape index: {}]
  %s3 = inlined_call_operand.hbm [shape: f32[8,128], index: 3, kind: output, shape index: {}]
  %s4 = sld [smem:[#allocation0]]
  $region30: #{tpu_custom_call.1} parent=0
    _
  %s6 = ssub.s32 1, %s4
  %s7 = scalar_select 0, %s6, %s4
  $region1: #{tpu_custom_call.1} parent=0
    #allocation2 [shape = 'u8[8192]{0}', space=vmem, size = 0x2000, scoped, tag = 'input window, operand 0, single buffered']
    #allocation3 [shape = 's32[1]{0}', space=sflag, size = 0x4, scoped, tag = 'scoped memory for tpu_custom_call.1']
    #allocation4 [shape = 's32[1]{0}', space=sflag, size = 0x4, scoped, tag = 'scoped memory for tpu_custom_call.1']
    #allocation5 [shape = 'u8[49152]{0}', space=vmem, size = 0xc000, scoped, tag = 'input window, operand 1, single buffered']
    #allocation6 [shape = 's32[1]{0}', space=sflag, size = 0x4, scoped, tag = 'scoped memory for tpu_custom_call.1']
    #allocation7 [shape = 'u8[4096]{0}', space=vmem, size = 0x1000, scoped, tag = 'output window, operand 0, single buffered']
    %8 = vsyncpa [#allocation3], 0
    %9 = vsyncpa [#allocation6], 0
    %10 = vsyncpa [#allocation4], 0
    // Predicated region
    $region2: #{tpu_custom_call.1} parent=1 // pred_check
      _
    $region3: #{tpu_custom_call.1} parent=1 // pred_check_branch
      %12 = sbr.rel (0) target = $region5
    $region4: #{tpu_custom_call.1} parent=1 // pred_region
      %s14 = ssub.s32 256, 256
      %15 = vsyncadd [#allocation3], %s14
      %s17 = sshll.u32 [#allocation2], 4
      %s18 = int_to_ptr.vmem [resolvable:$true] %s17
      %20 = dma.hbm_to_vmem [thread:$0]  %s0, 256, %s18, [#allocation3]
    $region5: #{tpu_custom_call.1} parent=1 // pred_fallthru
      _
    // Predicated region
    $region6: #{tpu_custom_call.1} parent=1 // pred_check
      _
    $region7: #{tpu_custom_call.1} parent=1 // pred_check_branch
      %22 = sbr.rel (0) target = $region9
    $region8: #{tpu_custom_call.1} parent=1 // pred_region
      %s24 = ssub.s32 1536, 1536
      %25 = vsyncadd [#allocation6], %s24
      %s26 = sshll.u32 [#allocation5], 4
      %s27 = int_to_ptr.vmem [resolvable:$true] %s26
      %32 = dma.hbm_to_vmem [thread:$0]  %s1, 1536, %s27, [#allocation6], 64, 64, 4
    $region9: #{tpu_custom_call.1} parent=1 // pred_fallthru
      _
    // Predicated region
    $region10: #{tpu_custom_call.1} parent=1 // pred_check
      _
    $region11: #{tpu_custom_call.1} parent=1 // pred_check_branch
      %34 = sbr.rel (0) target = $region13
    $region12: #{tpu_custom_call.1} parent=1 // pred_region
      _
    $region13: #{tpu_custom_call.1} parent=1 // pred_fallthru
      _
    // Predicated region
    $region14: #{tpu_custom_call.1} parent=1 // pred_check
      _
    $region15: #{tpu_custom_call.1} parent=1 // pred_check_branch
      %36 = sbr.rel (0) target = $region17
    $region16: #{tpu_custom_call.1} parent=1 // pred_region
      %37 = dma.done [#allocation3], 256
    $region17: #{tpu_custom_call.1} parent=1 // pred_fallthru
      _
    // Predicated region
    $region18: #{tpu_custom_call.1} parent=1 // pred_check
      _
    $region19: #{tpu_custom_call.1} parent=1 // pred_check_branch
      %39 = sbr.rel (0) target = $region21
    $region20: #{tpu_custom_call.1} parent=1 // pred_region
      %40 = dma.done [#allocation6], 1536
    $region21: #{tpu_custom_call.1} parent=1 // pred_fallthru
      _
    %v42 = vld [vmem:[#allocation2] sm:$0xff]
    %v43 = vld [vmem:[#allocation2 + $0x8] sm:$0xff]
    %v44 = vpack.c.bf16 %v42, %v42
    %v45 = vpack.c.bf16 %v43, %v43
    %v46 = vld [vmem:[#allocation5] sm:$0xf]
    %v47 = vld [vmem:[#allocation5 + $0x4] sm:$0xf]
    %v48 = vld [vmem:[#allocation5 + $0x8] sm:$0xf]
    %v49 = vld [vmem:[#allocation5 + $0xc] sm:$0xf]
    %v50 = vld [vmem:[#allocation5 + $0x10] sm:$0xf]
    %v51 = vld [vmem:[#allocation5 + $0x14] sm:$0xf]
    %v52 = vld [vmem:[#allocation5 + $0x18] sm:$0xf]
    %v53 = vld [vmem:[#allocation5 + $0x1c] sm:$0xf]
    %v54 = vld [vmem:[#allocation5 + $0x20] sm:$0xf]
    %v55 = vld [vmem:[#allocation5 + $0x24] sm:$0xf]
    %v56 = vld [vmem:[#allocation5 + $0x28] sm:$0xf]
    %v57 = vld [vmem:[#allocation5 + $0x2c] sm:$0xf]
    %v58 = vld [vmem:[#allocation5 + $0x30] sm:$0xf]
    %v59 = vld [vmem:[#allocation5 + $0x34] sm:$0xf]
    %v60 = vld [vmem:[#allocation5 + $0x38] sm:$0xf]
    %v61 = vld [vmem:[#allocation5 + $0x3c] sm:$0xf]
    %v62 = vld [vmem:[#allocation5 + $0x40] sm:$0xf]
    %v63 = vld [vmem:[#allocation5 + $0x44] sm:$0xf]
    %v64 = vld [vmem:[#allocation5 + $0x48] sm:$0xf]
    %v65 = vld [vmem:[#allocation5 + $0x4c] sm:$0xf]
    %v66 = vld [vmem:[#allocation5 + $0x50] sm:$0xf]
    %v67 = vld [vmem:[#allocation5 + $0x54] sm:$0xf]
    %v68 = vld [vmem:[#allocation5 + $0x58] sm:$0xf]
    %v69 = vld [vmem:[#allocation5 + $0x5c] sm:$0xf]
    %v70 = vld [vmem:[%s2] sm:$0xf]
    %v72 = vrot.slane %v70, 4
    %vm74 = vcmask 1043456
    %v75 = vsel %vm74, %v70, %v72
    %v100 = vunpack.c.l.b16 %v46
    %v101 = vunpack.c.l.b16 %v47
    %v102 = vunpack.c.l.b16 %v48
    %v103 = vunpack.c.l.b16 %v49
    %v104 = vunpack.c.l.b16 %v50
    %v105 = vunpack.c.l.b16 %v51
    %v106 = vunpack.c.l.b16 %v52
    %v107 = vunpack.c.l.b16 %v53
    %v108 = vunpack.c.l.b16 %v54
    %v109 = vunpack.c.l.b16 %v55
    %v110 = vunpack.c.l.b16 %v56
    %v111 = vunpack.c.l.b16 %v57
    %v112 = vunpack.c.l.b16 %v58
    %v113 = vunpack.c.l.b16 %v59
    %v114 = vunpack.c.l.b16 %v60
    %v115 = vunpack.c.l.b16 %v61
    %v116 = vunpack.c.l.b16 %v62
    %v117 = vunpack.c.l.b16 %v63
    %v118 = vunpack.c.l.b16 %v64
    %v119 = vunpack.c.l.b16 %v65
    %v120 = vunpack.c.l.b16 %v66
    %v121 = vunpack.c.l.b16 %v67
    %v122 = vunpack.c.l.b16 %v68
    %v123 = vunpack.c.l.b16 %v69
    %v124 = vpack.c.b16 %v101, %v100
    %v125 = vpack.c.b16 %v103, %v102
    %v126 = vpack.c.b16 %v105, %v104
    %v127 = vpack.c.b16 %v107, %v106
    %v128 = vpack.c.b16 %v109, %v108
    %v129 = vpack.c.b16 %v111, %v110
    %v130 = vpack.c.b16 %v113, %v112
    %v131 = vpack.c.b16 %v115, %v114
    %v132 = vpack.c.b16 %v117, %v116
    %v133 = vpack.c.b16 %v119, %v118
    %v134 = vpack.c.b16 %v121, %v120
    %v135 = vpack.c.b16 %v123, %v122
    %vm148 = vcmask 523264
    %v150 = vsel %vm148, %v45, 0
    %152 = vmatprep.subr.bf16.mxu0 0
    %153 = vmatpush1.bf16.msra.mxu0 %v124
    %154 = vmatprep.subr.bf16.mxu0 0
    %155 = vmatpush1.bf16.msra.mxu0 %v125
    %156 = vmatprep.subr.bf16.mxu0 0
    %157 = vmatpush1.bf16.msra.mxu0 %v126
    %158 = vmatprep.subr.bf16.mxu0 0
    %159 = vmatpush1.bf16.msra.mxu0 %v127
    %160 = vmatprep.subr.bf16.mxu0 0
    %161 = vmatpush1.bf16.msra.mxu0 %v128
    %162 = vmatprep.subr.bf16.mxu0 0
    %163 = vmatpush1.bf16.msra.mxu0 %v129
    %164 = vmatprep.subr.bf16.mxu0 0
    %165 = vmatpush1.bf16.msra.mxu0 %v130
    %166 = vmatprep.subr.bf16.mxu0 0
    %167 = vmatpush1.bf16.msra.mxu0 %v131
    %168 = vmatprep.subr.bf16.mxu0 0
    %169 = vmatpush1.bf16.msra.mxu0 %v132
    %170 = vmatprep.subr.bf16.mxu0 0
    %171 = vmatpush1.bf16.msra.mxu0 %v133
    %172 = vmatprep.subr.bf16.mxu0 0
    %173 = vmatpush1.bf16.msra.mxu0 %v134
    %174 = vmatprep.subr.bf16.mxu0 0
    %175 = vmatpush1.bf16.msra.mxu0 %v135
    %176 = vmatprep.subr.bf16.mxu0 0
    %177 = vmatpush1.bf16.msra.mxu0 0
    %178 = vmatprep.subr.bf16.mxu0 0
    %179 = vmatpush1.bf16.msra.mxu0 0
    %180 = vmatprep.subr.bf16.mxu0 0
    %181 = vmatpush1.bf16.msra.mxu0 0
    %182 = vmatprep.subr.bf16.mxu0 0
    %183 = vmatpush1.bf16.msra.mxu0 0
    %184 = vmatprep.mubr.bf16.mxu0 %v150
    %185 = vmatmul.mubr.bf16.gmra.mrb[0].mxu0 %v44
    %v186 = vpop.f32.mrb[0].mxu0
    %v187 = vadd.f32 %v75, %v186
    %v188 = vpop.f32.mrb[0].mxu0
    %v189 = vpop.f32.mrb[0].mxu0
    %v190 = vpop.f32.mrb[0].mxu0
    %191 = vdwg.mxu0
    %192 = vst [vmem:[#allocation7] sm:$0xff] %v187
    // Predicated region
    $region22: #{tpu_custom_call.1} parent=1 // pred_check
      _
    $region23: #{tpu_custom_call.1} parent=1 // pred_check_branch
      %194 = sbr.rel (0) target = $region25
    $region24: #{tpu_custom_call.1} parent=1 // pred_region
      %s196 = ssub.s32 128, 128
      %197 = vsyncadd [#allocation4], %s196
      %s199 = sshll.u32 [#allocation7], 4
      %s200 = int_to_ptr.vmem [resolvable:$true] %s199
      %202 = dma.vmem_to_hbm [thread:$0]  %s200, 128, %s3, [#allocation4]
    $region25: #{tpu_custom_call.1} parent=1 // pred_fallthru
      _
    // Predicated region
    $region26: #{tpu_custom_call.1} parent=1 // pred_check
      _
    $region27: #{tpu_custom_call.1} parent=1 // pred_check_branch
      %204 = sbr.rel (0) target = $region29
    $region28: #{tpu_custom_call.1} parent=1 // pred_region
      %205 = dma.done [#allocation4], 128
    $region29: #{tpu_custom_call.1} parent=1 // pred_fallthru
      _
    %206 = vsyncpa [#allocation3], 1
    %207 = vsyncpa [#allocation6], 1
    %208 = vsyncpa [#allocation4], 1

</llo_original>
